<compile_context>
chip_gen: v7x
topology: tpu7x:2x2x1
jax: 0.10.0
libtpu: 0.0.40
codegen_flags: <defaults>
</compile_context>

<pallas_src>
import jax
import jax.numpy as jnp
from jax.experimental import pallas as pl
from jax.experimental.pallas import tpu as pltpu


_LANE = 128
# Keep scoped VMEM conservative so the same tiles work on v7x (64 MiB
# physical) as well as v5e/v6e (128 MiB physical).
_VMEM_LIMIT_BYTES = 32 * 1024 * 1024
# Budget for the double-buffered output block (the dominant VMEM consumer).
_OUT_BUDGET_BYTES = 12 * 1024 * 1024


def _kron_kernel_batched(a_ref, b_ref, o_ref):
    # a_ref, b_ref: (nb, C, HWp); o_ref: (nb, HWp, HWp).
    nb = a_ref.shape[0]
    for n in range(nb):  # nb is small and static -> unrolled MXU calls
        o_ref[n, :, :] = jax.lax.dot_general(
            a_ref[n, :, :],
            b_ref[n, :, :],
            dimension_numbers=(((0,), (0,)), ((), ())),
            preferred_element_type=jnp.float32,
        ).astype(o_ref.dtype)


def _kron_kernel_tiled(a_ref, b_ref, o_ref):
    # a_ref: (C, tm), b_ref: (C, tn), o_ref: (tm, tn).
    o_ref[...] = jax.lax.dot_general(
        a_ref[...],
        b_ref[...],
        dimension_numbers=(((0,), (0,)), ((), ())),
        preferred_element_type=jnp.float32,
    ).astype(o_ref.dtype)


def _largest_divisor_leq(n, cap):
    for d in range(min(n, cap), 0, -1):
        if n % d == 0:
            return d
    return 1


def _pick_tile(hw, candidates):
    for c in candidates:
        if hw % c == 0:
            return c
    return hw


def kron_matching(a, b, *, force_tiled=False):
    assert a.ndim == 4 and b.ndim == 4
    assert a.shape == b.shape
    N, C, H, W = a.shape
    HW = H * W
    dtype = a.dtype
    itemsize = jnp.dtype(dtype).itemsize

    # Both inputs as (N, C, HW): plain reshape, no HBM transpose pass.
    a_flat = a.reshape(N, C, HW)
    b_flat = b.reshape(N, C, HW)

    # Pad HW to a lane multiple so every output store is a full-lane vst.
    HWp = ((HW + _LANE - 1) // _LANE) * _LANE
    if HWp != HW:
        pad = HWp - HW
        a_flat = jnp.pad(a_flat, ((0, 0), (0, 0), (0, pad)))
        b_flat = jnp.pad(b_flat, ((0, 0), (0, 0), (0, pad)))

    cost = pl.CostEstimate(
        flops=2 * N * C * HWp * HWp,
        transcendentals=0,
        bytes_accessed=(N * HWp * HWp + 2 * N * C * HWp) * itemsize,
    )

    out_block_bytes = HWp * HWp * itemsize
    use_tiled = force_tiled or (2 * out_block_bytes > _OUT_BUDGET_BYTES)

    if not use_tiled:
        # Small-HW path: batch several n per grid step to amortize per-step
        # overhead (output writeback per n is small here).
        nb_cap = max(1, _OUT_BUDGET_BYTES // (2 * out_block_bytes))
        nb = _largest_divisor_leq(N, min(nb_cap, 8))
        out = pl.pallas_call(
            _kron_kernel_batched,
            out_shape=jax.ShapeDtypeStruct((N, HWp, HWp), dtype),
            grid_spec=pltpu.PrefetchScalarGridSpec(
                num_scalar_prefetch=0,
                grid=(N // nb,),
                in_specs=[
                    pl.BlockSpec((nb, C, HWp), lambda n: (n, 0, 0)),
                    pl.BlockSpec((nb, C, HWp), lambda n: (n, 0, 0)),
                ],
                out_specs=pl.BlockSpec((nb, HWp, HWp), lambda n: (n, 0, 0)),
            ),
            compiler_params=pltpu.CompilerParams(
                dimension_semantics=("parallel",),
                vmem_limit_bytes=_VMEM_LIMIT_BYTES,
            ),
            cost_estimate=cost,
        )(a_flat, b_flat)
    else:
        # Large-HW path: tile the (HWp, HWp) output so the double-buffered
        # output block always fits VMEM. K = C is untiled, so there is no
        # reduction axis and every grid axis is "parallel".
        tm = _pick_tile(HWp, (512, 256, 128))
        tn = _pick_tile(
            HWp,
            tuple(
                t
                for t in (2048, 1024, 512, 256, 128)
                if 2 * tm * t * itemsize <= _OUT_BUDGET_BYTES
            ),
        )
        out = pl.pallas_call(
            _kron_kernel_tiled,
            out_shape=jax.ShapeDtypeStruct((N, HWp, HWp), dtype),
            grid_spec=pltpu.PrefetchScalarGridSpec(
                num_scalar_prefetch=0,
                # j innermost so the (C, tm) a-block stays VMEM-resident
                # across a full row of output tiles.
                grid=(N, HWp // tm, HWp // tn),
                in_specs=[
                    pl.BlockSpec(
                        (pl.Squeezed(), C, tm), lambda n, i, j: (n, 0, i)
                    ),
                    pl.BlockSpec(
                        (pl.Squeezed(), C, tn), lambda n, i, j: (n, 0, j)
                    ),
                ],
                out_specs=pl.BlockSpec(
                    (pl.Squeezed(), tm, tn), lambda n, i, j: (n, i, j)
                ),
            ),
            compiler_params=pltpu.CompilerParams(
                dimension_semantics=("parallel", "parallel", "parallel"),
                vmem_limit_bytes=_VMEM_LIMIT_BYTES,
            ),
            cost_estimate=cost,
        )(a_flat, b_flat)

    if HWp != HW:
        out = out[:, :HW, :HW]
    return out.reshape(N, H, W, H, W)


if __name__ == "__main__":
    # KronMatching has no parameters; only the two 4-D inputs are needed.
    N, C, H, W = 2, 4, 16, 16
    key = jax.random.PRNGKey(0)
    k1, k2 = jax.random.split(key)
    x0 = jax.random.normal(k1, (N, C, H, W), dtype=jnp.float32)
    x1 = jax.random.normal(k2, (N, C, H, W), dtype=jnp.float32)

    ref = jnp.einsum("nchw,ncij->nhwij", x0, x1)

    # Main (small-HW, batched) path.
    out = jax.block_until_ready(kron_matching(x0, x1))
    assert out.shape == (N, H, W, H, W), out.shape
    assert jnp.allclose(out, ref, atol=1e-4, rtol=1e-4)

    # Padding path: HW = 64 -> padded to 128 lanes, then sliced back.
    x2 = jax.random.normal(k1, (2, 4, 8, 8), dtype=jnp.float32)
    x3 = jax.random.normal(k2, (2, 4, 8, 8), dtype=jnp.float32)
    out2 = jax.block_until_ready(kron_matching(x2, x3))
    ref2 = jnp.einsum("nchw,ncij->nhwij", x2, x3)
    assert jnp.allclose(out2, ref2, atol=1e-4, rtol=1e-4)

    # Tiled-output path (exercised here at small HW for a correctness check).
    out3 = jax.block_until_ready(kron_matching(x0, x1, force_tiled=True))
    assert jnp.allclose(out3, ref, atol=1e-4, rtol=1e-4)

    print("KERNEL_OK")
</pallas_src>

<mosaic_0001>
module attributes {stable_mosaic.version = 11 : i64} {
  func.func @_kron_kernel_batched(%arg0: i32, %arg1: memref<2x4x256xf32, #tpu.memory_space<vmem>>, %arg2: memref<2x4x256xf32, #tpu.memory_space<vmem>>, %arg3: memref<2x256x256xf32, #tpu.memory_space<vmem>>) attributes {dimension_semantics = [#tpu.dimension_semantics<parallel>], iteration_bounds = array<i64: 1>, scalar_prefetch = 0 : i64, scratch_operands = 0 : i64, tpu.core_type = #tpu.core_type<tc>, window_params = [{transform_indices = @transform_0, window_bounds = array<i64: 2, 4, 256>}, {transform_indices = @transform_1, window_bounds = array<i64: 2, 4, 256>}, {transform_indices = @transform_2, window_bounds = array<i64: 2, 256, 256>}]} {
    %c0 = arith.constant 0 : index
    %c0_0 = arith.constant 0 : index
    %c0_1 = arith.constant 0 : index
    %0 = vector.load %arg1[%c0, %c0_0, %c0_1] : memref<2x4x256xf32, #tpu.memory_space<vmem>>, vector<1x4x256xf32>
    %1 = vector.shape_cast %0 : vector<1x4x256xf32> to vector<4x256xf32>
    %c0_2 = arith.constant 0 : index
    %c0_3 = arith.constant 0 : index
    %c0_4 = arith.constant 0 : index
    %2 = vector.load %arg2[%c0_2, %c0_3, %c0_4] : memref<2x4x256xf32, #tpu.memory_space<vmem>>, vector<1x4x256xf32>
    %3 = vector.shape_cast %2 : vector<1x4x256xf32> to vector<4x256xf32>
    %cst = arith.constant dense<0.000000e+00> : vector<256x256xf32>
    %4 = tpu.matmul %1, %3, %cst {dimension_numbers = #tpu.dot_dimension_numbers<[0], [0], [1], [1], [0, 1, 1, 1], [], []>} : vector<4x256xf32>, vector<4x256xf32>, vector<256x256xf32> -> vector<256x256xf32>
    %c0_5 = arith.constant 0 : index
    %c0_6 = arith.constant 0 : index
    %c0_7 = arith.constant 0 : index
    %5 = vector.load %arg3[%c0_5, %c0_6, %c0_7] : memref<2x256x256xf32, #tpu.memory_space<vmem>>, vector<1x256x256xf32>
    %6 = vector.shape_cast %5 : vector<1x256x256xf32> to vector<256x256xf32>
    %7 = vector.shape_cast %4 : vector<256x256xf32> to vector<1x256x256xf32>
    tpu.vector_store %arg3[%c0_5, %c0_6, %c0_7], %7 {strides = array<i32>} : memref<2x256x256xf32, #tpu.memory_space<vmem>>, vector<1x256x256xf32>,
    %c1 = arith.constant 1 : index
    %c0_8 = arith.constant 0 : index
    %c0_9 = arith.constant 0 : index
    %8 = vector.load %arg1[%c1, %c0_8, %c0_9] : memref<2x4x256xf32, #tpu.memory_space<vmem>>, vector<1x4x256xf32>
    %9 = vector.shape_cast %8 : vector<1x4x256xf32> to vector<4x256xf32>
    %c1_10 = arith.constant 1 : index
    %c0_11 = arith.constant 0 : index
    %c0_12 = arith.constant 0 : index
    %10 = vector.load %arg2[%c1_10, %c0_11, %c0_12] : memref<2x4x256xf32, #tpu.memory_space<vmem>>, vector<1x4x256xf32>
    %11 = vector.shape_cast %10 : vector<1x4x256xf32> to vector<4x256xf32>
    %cst_13 = arith.constant dense<0.000000e+00> : vector<256x256xf32>
    %12 = tpu.matmul %9, %11, %cst_13 {dimension_numbers = #tpu.dot_dimension_numbers<[0], [0], [1], [1], [0, 1, 1, 1], [], []>} : vector<4x256xf32>, vector<4x256xf32>, vector<256x256xf32> -> vector<256x256xf32>
    %c1_14 = arith.constant 1 : index
    %c0_15 = arith.constant 0 : index
    %c0_16 = arith.constant 0 : index
    %13 = vector.load %arg3[%c1_14, %c0_15, %c0_16] : memref<2x256x256xf32, #tpu.memory_space<vmem>>, vector<1x256x256xf32>
    %14 = vector.shape_cast %13 : vector<1x256x256xf32> to vector<256x256xf32>
    %15 = vector.shape_cast %12 : vector<256x256xf32> to vector<1x256x256xf32>
    tpu.vector_store %arg3[%c1_14, %c0_15, %c0_16], %15 {strides = array<i32>} : memref<2x256x256xf32, #tpu.memory_space<vmem>>, vector<1x256x256xf32>,
    return
  }
  func.func @transform_0(%arg0: i32) -> (i32, i32, i32) {
    %c0_i32 = arith.constant 0 : i32
    %c0_i32_0 = arith.constant 0 : i32
    %c0_i32_1 = arith.constant 0 : i32
    return %arg0, %c0_i32, %c0_i32_0 : i32, i32, i32
  }
  func.func @transform_1(%arg0: i32) -> (i32, i32, i32) {
    %c0_i32 = arith.constant 0 : i32
    %c0_i32_0 = arith.constant 0 : i32
    %c0_i32_1 = arith.constant 0 : i32
    return %arg0, %c0_i32, %c0_i32_0 : i32, i32, i32
  }
  func.func @transform_2(%arg0: i32) -> (i32, i32, i32) {
    %c0_i32 = arith.constant 0 : i32
    %c0_i32_0 = arith.constant 0 : i32
    %c0_i32_1 = arith.constant 0 : i32
    return %arg0, %c0_i32, %c0_i32_0 : i32, i32, i32
  }
}

</mosaic_0001>

<llo_original>
// kernel: tpu_custom_call.1
$region0: #{tpu_custom_call.1}
  #allocation0 [shape = 'u32[]', space=smem, size = 0x4, offset = 0x4, fixed_abs, tag = 'smem constant byte address 0x4 - core index']
  #allocation1 [shape = 'u32[144,128]{1,0:T(1,128)}', space=vmem, size = 0x12000, scoped, tag = 'internal scratch']
  %s0 = inlined_call_operand.hbm [shape: f32[2,4,256], index: 0, kind: input, shape index: {}]
  %s1 = inlined_call_operand.hbm [shape: f32[2,4,256], index: 1, kind: input, shape index: {}]
  %s2 = inlined_call_operand.hbm [shape: f32[2,256,256], index: 2, kind: output, shape index: {}]
  %s3 = sld [smem:[#allocation0]]
  $region26: #{tpu_custom_call.1} parent=0
    _
  %s5 = ssub.s32 1, %s3
  %s6 = scalar_select 0, %s5, %s3
  $region1: #{tpu_custom_call.1} parent=0
    #allocation2 [shape = 'u8[8192]{0}', space=vmem, size = 0x2000, scoped, tag = 'input window, operand 0, single buffered']
    #allocation3 [shape = 's32[1]{0}', space=sflag, size = 0x4, scoped, tag = 'scoped memory for tpu_custom_call.1']
    #allocation4 [shape = 's32[1]{0}', space=sflag, size = 0x4, scoped, tag = 'scoped memory for tpu_custom_call.1']
    #allocation5 [shape = 'u8[8192]{0}', space=vmem, size = 0x2000, scoped, tag = 'input window, operand 1, single buffered']
    #allocation6 [shape = 's32[1]{0}', space=sflag, size = 0x4, scoped, tag = 'scoped memory for tpu_custom_call.1']
    #allocation7 [shape = 'u8[524288]{0}', space=vmem, size = 0x80000, scoped, tag = 'output window, operand 0, single buffered']
    %7 = vsyncpa [#allocation3], 0
    %8 = vsyncpa [#allocation6], 0
    %9 = vsyncpa [#allocation4], 0
    // Predicated region
    $region2: #{tpu_custom_call.1} parent=1 // pred_check
      _
    $region3: #{tpu_custom_call.1} parent=1 // pred_check_branch
      %11 = sbr.rel (0) target = $region5
    $region4: #{tpu_custom_call.1} parent=1 // pred_region
      %s13 = ssub.s32 256, 256
      %14 = vsyncadd [#allocation3], %s13
      %s15 = sshll.u32 [#allocation2], 4
      %s16 = int_to_ptr.vmem [resolvable:$true] %s15
      %21 = dma.hbm_to_vmem [thread:$0]  %s0, 256, %s16, [#allocation3], 128, 128, 8
    $region5: #{tpu_custom_call.1} parent=1 // pred_fallthru
      _
    // Predicated region
    $region6: #{tpu_custom_call.1} parent=1 // pred_check
      _
    $region7: #{tpu_custom_call.1} parent=1 // pred_check_branch
      %23 = sbr.rel (0) target = $region9
    $region8: #{tpu_custom_call.1} parent=1 // pred_region
      %s25 = ssub.s32 256, 256
      %26 = vsyncadd [#allocation6], %s25
      %s27 = sshll.u32 [#allocation5], 4
      %s28 = int_to_ptr.vmem [resolvable:$true] %s27
      %33 = dma.hbm_to_vmem [thread:$0]  %s1, 256, %s28, [#allocation6], 128, 128, 8
    $region9: #{tpu_custom_call.1} parent=1 // pred_fallthru
      _
    // Predicated region
    $region10: #{tpu_custom_call.1} parent=1 // pred_check
      _
    $region11: #{tpu_custom_call.1} parent=1 // pred_check_branch
      %35 = sbr.rel (0) target = $region13
    $region12: #{tpu_custom_call.1} parent=1 // pred_region
      %36 = dma.done [#allocation3], 256
    $region13: #{tpu_custom_call.1} parent=1 // pred_fallthru
      _
    // Predicated region
    $region14: #{tpu_custom_call.1} parent=1 // pred_check
      _
    $region15: #{tpu_custom_call.1} parent=1 // pred_check_branch
      %38 = sbr.rel (0) target = $region17
    $region16: #{tpu_custom_call.1} parent=1 // pred_region
      %39 = dma.done [#allocation6], 256
    $region17: #{tpu_custom_call.1} parent=1 // pred_fallthru
      _
    %v40 = vld [vmem:[#allocation2] sm:$0xff]
    %v41 = vld [vmem:[#allocation5] sm:$0xff]
    %v43 = vcombine.high %v40, %v40
    %45 = vxpose.xlu0.b32.start [1/16] %v40, 128
    %46 = vxpose.xlu0.b32.cont [2/16] 0.0, 128
    %47 = vxpose.xlu0.b32.cont [3/16] 0.0, 128
    %48 = vxpose.xlu0.b32.cont [4/16] 0.0, 128
    %49 = vxpose.xlu0.b32.cont [5/16] 0.0, 128
    %50 = vxpose.xlu0.b32.cont [6/16] 0.0, 128
    %51 = vxpose.xlu0.b32.cont [7/16] 0.0, 128
    %52 = vxpose.xlu0.b32.cont [8/16] 0.0, 128
    %53 = vxpose.xlu0.b32.cont [9/16] 0.0, 128
    %54 = vxpose.xlu0.b32.cont [10/16] 0.0, 128
    %55 = vxpose.xlu0.b32.cont [11/16] 0.0, 128
    %56 = vxpose.xlu0.b32.cont [12/16] 0.0, 128
    %57 = vxpose.xlu0.b32.cont [13/16] 0.0, 128
    %58 = vxpose.xlu0.b32.cont [14/16] 0.0, 128
    %59 = vxpose.xlu0.b32.cont [15/16] 0.0, 128
    %60 = vxpose.xlu0.b32.end [16/16] 0.0, 128
    %v61 = vpop.trf.xlu0
    %v62 = vpop.trf.xlu0
    %v63 = vpop.trf.xlu0
    %v64 = vpop.trf.xlu0
    %v65 = vpop.trf.xlu0
    %v66 = vpop.trf.xlu0
    %v67 = vpop.trf.xlu0
    %v68 = vpop.trf.xlu0
    %v69 = vpop.trf.xlu0
    %v70 = vpop.trf.xlu0
    %v71 = vpop.trf.xlu0
    %v72 = vpop.trf.xlu0
    %v73 = vpop.trf.xlu0
    %v74 = vpop.trf.xlu0
    %v75 = vpop.trf.xlu0
    %v76 = vpop.trf.xlu0
    %77 = vxpose.xlu0.b32.start [1/16] %v43, 128
    %78 = vxpose.xlu0.b32.cont [2/16] 0.0, 128
    %79 = vxpose.xlu0.b32.cont [3/16] 0.0, 128
    %80 = vxpose.xlu0.b32.cont [4/16] 0.0, 128
    %81 = vxpose.xlu0.b32.cont [5/16] 0.0, 128
    %82 = vxpose.xlu0.b32.cont [6/16] 0.0, 128
    %83 = vxpose.xlu0.b32.cont [7/16] 0.0, 128
    %84 = vxpose.xlu0.b32.cont [8/16] 0.0, 128
    %85 = vxpose.xlu0.b32.cont [9/16] 0.0, 128
    %86 = vxpose.xlu0.b32.cont [10/16] 0.0, 128
    %87 = vxpose.xlu0.b32.cont [11/16] 0.0, 128
    %88 = vxpose.xlu0.b32.cont [12/16] 0.0, 128
    %89 = vxpose.xlu0.b32.cont [13/16] 0.0, 128
    %90 = vxpose.xlu0.b32.cont [14/16] 0.0, 128
    %91 = vxpose.xlu0.b32.cont [15/16] 0.0, 128
    %92 = vxpose.xlu0.b32.end [16/16] 0.0, 128
    %v93 = vpop.trf.xlu0
    %v94 = vpop.trf.xlu0
    %v95 = vpop.trf.xlu0
    %v96 = vpop.trf.xlu0
    %v97 = vpop.trf.xlu0
    %v98 = vpop.trf.xlu0
    %v99 = vpop.trf.xlu0
    %v100 = vpop.trf.xlu0
    %v101 = vpop.trf.xlu0
    %v102 = vpop.trf.xlu0
    %v103 = vpop.trf.xlu0
    %v104 = vpop.trf.xlu0
    %v105 = vpop.trf.xlu0
    %v106 = vpop.trf.xlu0
    %v107 = vpop.trf.xlu0
    %v108 = vpop.trf.xlu0
    %v110 = vcombine.high %v41, %v41
    %vm111 = vcmask 31744
    %v113 = vsel %vm111, %v61, 0
    %v116 = vsel %vm111, %v62, 0
    %v119 = vsel %vm111, %v63, 0
    %v122 = vsel %vm111, %v64, 0
    %v125 = vsel %vm111, %v65, 0
    %v128 = vsel %vm111, %v66, 0
    %v131 = vsel %vm111, %v67, 0
    %v134 = vsel %vm111, %v68, 0
    %v137 = vsel %vm111, %v69, 0
    %v140 = vsel %vm111, %v70, 0
    %v143 = vsel %vm111, %v71, 0
    %v146 = vsel %vm111, %v72, 0
    %v149 = vsel %vm111, %v73, 0
    %v152 = vsel %vm111, %v74, 0
    %v155 = vsel %vm111, %v75, 0
    %v158 = vsel %vm111, %v76, 0
    %v161 = vsel %vm111, %v93, 0
    %v164 = vsel %vm111, %v94, 0
    %v167 = vsel %vm111, %v95, 0
    %v170 = vsel %vm111, %v96, 0
    %v173 = vsel %vm111, %v97, 0
    %v176 = vsel %vm111, %v98, 0
    %v179 = vsel %vm111, %v99, 0
    %v182 = vsel %vm111, %v100, 0
    %v185 = vsel %vm111, %v101, 0
    %v188 = vsel %vm111, %v102, 0
    %v191 = vsel %vm111, %v103, 0
    %v194 = vsel %vm111, %v104, 0
    %v197 = vsel %vm111, %v105, 0
    %v200 = vsel %vm111, %v106, 0
    %v203 = vsel %vm111, %v107, 0
    %v206 = vsel %vm111, %v108, 0
    %vm208 = vcmask 1043456
    %v209 = vsel %vm208, %v41, 0
    %v211 = vsel %vm208, %v110, 0
    %213 = vmatprep.subr.mxu0 %v211
    %214 = vmatpush1.msra.mxu0 %v209
    %215 = vmatprep.subr.mxu0 0.0
    %216 = vmatpush1.msra.mxu0 0.0
    %217 = vmatprep.subr.mxu0 0.0
    %218 = vmatpush1.msra.mxu0 0.0
    %219 = vmatprep.subr.mxu0 0.0
    %220 = vmatpush1.msra.mxu0 0.0
    %221 = vmatprep.subr.mxu0 0.0
    %222 = vmatpush1.msra.mxu0 0.0
    %223 = vmatprep.subr.mxu0 0.0
    %224 = vmatpush1.msra.mxu0 0.0
    %225 = vmatprep.subr.mxu0 0.0
    %226 = vmatpush1.msra.mxu0 0.0
    %227 = vmatprep.subr.mxu0 0.0
    %228 = vmatpush1.msra.mxu0 0.0
    %229 = vmatprep.subr.mxu0 0.0
    %230 = vmatpush1.msra.mxu0 0.0
    %231 = vmatprep.subr.mxu0 0.0
    %232 = vmatpush1.msra.mxu0 0.0
    %233 = vmatprep.subr.mxu0 0.0
    %234 = vmatpush1.msra.mxu0 0.0
    %235 = vmatprep.subr.mxu0 0.0
    %236 = vmatpush1.msra.mxu0 0.0
    %237 = vmatprep.subr.mxu0 0.0
    %238 = vmatpush1.msra.mxu0 0.0
    %239 = vmatprep.subr.mxu0 0.0
    %240 = vmatpush1.msra.mxu0 0.0
    %241 = vmatprep.subr.mxu0 0.0
    %242 = vmatpush1.msra.mxu0 0.0
    %243 = vmatprep.subr.mxu0 0.0
    %244 = vmatpush1.msra.mxu0 0.0
    %245 = vmatprep.subr.mxu0 0.0
    %246 = vmatpush1.msra.mxu0 0.0
    %247 = vmatprep.subr.mxu0 0.0
    %248 = vmatpush1.msra.mxu0 0.0
    %249 = vmatprep.subr.mxu0 0.0
    %250 = vmatpush1.msra.mxu0 0.0
    %251 = vmatprep.subr.mxu0 0.0
    %252 = vmatpush1.msra.mxu0 0.0
    %253 = vmatprep.subr.mxu0 0.0
    %254 = vmatpush1.msra.mxu0 0.0
    %255 = vmatprep.subr.mxu0 0.0
    %256 = vmatpush1.msra.mxu0 0.0
    %257 = vmatprep.subr.mxu0 0.0
    %258 = vmatpush1.msra.mxu0 0.0
    %259 = vmatprep.subr.mxu0 0.0
    %260 = vmatpush1.msra.mxu0 0.0
    %261 = vmatprep.subr.mxu0 0.0
    %262 = vmatpush1.msra.mxu0 0.0
    %263 = vmatprep.subr.mxu0 0.0
    %264 = vmatpush1.msra.mxu0 0.0
    %265 = vmatprep.subr.mxu0 0.0
    %266 = vmatpush1.msra.mxu0 0.0
    %267 = vmatprep.subr.mxu0 0.0
    %268 = vmatpush1.msra.mxu0 0.0
    %269 = vmatprep.subr.mxu0 0.0
    %270 = vmatpush1.msra.mxu0 0.0
    %271 = vmatprep.subr.mxu0 0.0
    %272 = vmatpush1.msra.mxu0 0.0
    %273 = vmatprep.subr.mxu0 0.0
    %274 = vmatpush1.msra.mxu0 0.0
    %275 = vmatprep.subr.mxu0 0.0
    %276 = vmatpush1.msra.mxu0 0.0
    %277 = vmatprep.mubr.f32.mxu0 0.0
    %278 = vmatmul.mubr.f32.gmra.mrb[0].mxu0 %v113
    %v279 = vpop.f32.mrb[0].mxu0
    %v280 = vadd.f32 0.0, %v279
    %v281 = vpop.f32.mrb[0].mxu0
    %v282 = vadd.f32 0.0, %v281
    %283 = vmatprep.mubr.f32.mxu0 0.0
    %284 = vmatmul.mubr.f32.gmra.mrb[0].mxu0 %v116
    %v285 = vpop.f32.mrb[0].mxu0
    %v286 = vadd.f32 0.0, %v285
    %v287 = vpop.f32.mrb[0].mxu0
    %v288 = vadd.f32 0.0, %v287
    %289 = vmatprep.mubr.f32.mxu0 0.0
    %290 = vmatmul.mubr.f32.gmra.mrb[0].mxu0 %v119
    %v291 = vpop.f32.mrb[0].mxu0
    %v292 = vadd.f32 0.0, %v291
    %v293 = vpop.f32.mrb[0].mxu0
    %v294 = vadd.f32 0.0, %v293
    %295 = vmatprep.mubr.f32.mxu0 0.0
    %296 = vmatmul.mubr.f32.gmra.mrb[0].mxu0 %v122
    %v297 = vpop.f32.mrb[0].mxu0
    %v298 = vadd.f32 0.0, %v297
    %v299 = vpop.f32.mrb[0].mxu0
    %v300 = vadd.f32 0.0, %v299
    %301 = vmatprep.mubr.f32.mxu0 0.0
    %302 = vmatmul.mubr.f32.gmra.mrb[0].mxu0 %v125
    %v303 = vpop.f32.mrb[0].mxu0
    %v304 = vadd.f32 0.0, %v303
    %v305 = vpop.f32.mrb[0].mxu0
    %v306 = vadd.f32 0.0, %v305
    %307 = vmatprep.mubr.f32.mxu0 0.0
    %308 = vmatmul.mubr.f32.gmra.mrb[0].mxu0 %v128
    %v309 = vpop.f32.mrb[0].mxu0
    %v310 = vadd.f32 0.0, %v309
    %v311 = vpop.f32.mrb[0].mxu0
    %v312 = vadd.f32 0.0, %v311
    %313 = vmatprep.mubr.f32.mxu0 0.0
    %314 = vmatmul.mubr.f32.gmra.mrb[0].mxu0 %v131
    %v315 = vpop.f32.mrb[0].mxu0
    %v316 = vadd.f32 0.0, %v315
    %v317 = vpop.f32.mrb[0].mxu0
    %v318 = vadd.f32 0.0, %v317
    %319 = vmatprep.mubr.f32.mxu0 0.0
    %320 = vmatmul.mubr.f32.gmra.mrb[0].mxu0 %v134
    %v321 = vpop.f32.mrb[0].mxu0
    %v322 = vadd.f32 0.0, %v321
    %v323 = vpop.f32.mrb[0].mxu0
    %v324 = vadd.f32 0.0, %v323
    %325 = vmatprep.mubr.f32.mxu0 0.0
    %326 = vmatmul.mubr.f32.gmra.mrb[0].mxu0 %v137
    %v327 = vpop.f32.mrb[0].mxu0
    %v328 = vadd.f32 0.0, %v327
    %v329 = vpop.f32.mrb[0].mxu0
    %v330 = vadd.f32 0.0, %v329
    %331 = vmatprep.mubr.f32.mxu0 0.0
    %332 = vmatmul.mubr.f32.gmra.mrb[0].mxu0 %v140
    %v333 = vpop.f32.mrb[0].mxu0
    %v334 = vadd.f32 0.0, %v333
    %v335 = vpop.f32.mrb[0].mxu0
    %v336 = vadd.f32 0.0, %v335
    %337 = vmatprep.mubr.f32.mxu0 0.0
    %338 = vmatmul.mubr.f32.gmra.mrb[0].mxu0 %v143
    %v339 = vpop.f32.mrb[0].mxu0
    %v340 = vadd.f32 0.0, %v339
    %v341 = vpop.f32.mrb[0].mxu0
    %v342 = vadd.f32 0.0, %v341
    %343 = vmatprep.mubr.f32.mxu0 0.0
    %344 = vmatmul.mubr.f32.gmra.mrb[0].mxu0 %v146
    %v345 = vpop.f32.mrb[0].mxu0
    %v346 = vadd.f32 0.0, %v345
    %v347 = vpop.f32.mrb[0].mxu0
    %v348 = vadd.f32 0.0, %v347
    %349 = vmatprep.mubr.f32.mxu0 0.0
    %350 = vmatmul.mubr.f32.gmra.mrb[0].mxu0 %v149
    %v351 = vpop.f32.mrb[0].mxu0
    %v352 = vadd.f32 0.0, %v351
    %v353 = vpop.f32.mrb[0].mxu0
    %v354 = vadd.f32 0.0, %v353
    %355 = vmatprep.mubr.f32.mxu0 0.0
    %356 = vmatmul.mubr.f32.gmra.mrb[0].mxu0 %v152
    %v357 = vpop.f32.mrb[0].mxu0
    %v358 = vadd.f32 0.0, %v357
    %v359 = vpop.f32.mrb[0].mxu0
    %v360 = vadd.f32 0.0, %v359
    %361 = vmatprep.mubr.f32.mxu0 0.0
    %362 = vmatmul.mubr.f32.gmra.mrb[0].mxu0 %v155
    %v363 = vpop.f32.mrb[0].mxu0
    %v364 = vadd.f32 0.0, %v363
    %v365 = vpop.f32.mrb[0].mxu0
    %v366 = vadd.f32 0.0, %v365
    %367 = vmatprep.mubr.f32.mxu0 0.0
    %368 = vmatmul.mubr.f32.gmra.mrb[0].mxu0 %v158
    %v369 = vpop.f32.mrb[0].mxu0
    %v370 = vadd.f32 0.0, %v369
    %v371 = vpop.f32.mrb[0].mxu0
    %v372 = vadd.f32 0.0, %v371
    %373 = vmatprep.mubr.f32.mxu0 0.0
    %374 = vmatmul.mubr.f32.gmra.mrb[0].mxu0 %v161
    %v375 = vpop.f32.mrb[0].mxu0
    %v376 = vadd.f32 0.0, %v375
    %v377 = vpop.f32.mrb[0].mxu0
    %v378 = vadd.f32 0.0, %v377
    %379 = vmatprep.mubr.f32.mxu0 0.0
    %380 = vmatmul.mubr.f32.gmra.mrb[0].mxu0 %v164
    %v381 = vpop.f32.mrb[0].mxu0
    %v382 = vadd.f32 0.0, %v381
    %v383 = vpop.f32.mrb[0].mxu0
    %v384 = vadd.f32 0.0, %v383
    %385 = vmatprep.mubr.f32.mxu0 0.0
    %386 = vmatmul.mubr.f32.gmra.mrb[0].mxu0 %v167
    %v387 = vpop.f32.mrb[0].mxu0
    %v388 = vadd.f32 0.0, %v387
    %v389 = vpop.f32.mrb[0].mxu0
    %v390 = vadd.f32 0.0, %v389
    %391 = vmatprep.mubr.f32.mxu0 0.0
    %392 = vmatmul.mubr.f32.gmra.mrb[0].mxu0 %v170
    %v393 = vpop.f32.mrb[0].mxu0
    %v394 = vadd.f32 0.0, %v393
    %v395 = vpop.f32.mrb[0].mxu0
    %v396 = vadd.f32 0.0, %v395
    %397 = vmatprep.mubr.f32.mxu0 0.0
    %398 = vmatmul.mubr.f32.gmra.mrb[0].mxu0 %v173
    %v399 = vpop.f32.mrb[0].mxu0
    %v400 = vadd.f32 0.0, %v399
    %v401 = vpop.f32.mrb[0].mxu0
    %v402 = vadd.f32 0.0, %v401
    %403 = vmatprep.mubr.f32.mxu0 0.0
    %404 = vmatmul.mubr.f32.gmra.mrb[0].mxu0 %v176
    %v405 = vpop.f32.mrb[0].mxu0
    %v406 = vadd.f32 0.0, %v405
    %v407 = vpop.f32.mrb[0].mxu0
    %v408 = vadd.f32 0.0, %v407
    %409 = vmatprep.mubr.f32.mxu0 0.0
    %410 = vmatmul.mubr.f32.gmra.mrb[0].mxu0 %v179
    %v411 = vpop.f32.mrb[0].mxu0
    %v412 = vadd.f32 0.0, %v411
    %v413 = vpop.f32.mrb[0].mxu0
    %v414 = vadd.f32 0.0, %v413
    %415 = vmatprep.mubr.f32.mxu0 0.0
    %416 = vmatmul.mubr.f32.gmra.mrb[0].mxu0 %v182
    %v417 = vpop.f32.mrb[0].mxu0
    %v418 = vadd.f32 0.0, %v417
    %v419 = vpop.f32.mrb[0].mxu0
    %v420 = vadd.f32 0.0, %v419
    %421 = vmatprep.mubr.f32.mxu0 0.0
    %422 = vmatmul.mubr.f32.gmra.mrb[0].mxu0 %v185
    %v423 = vpop.f32.mrb[0].mxu0
    %v424 = vadd.f32 0.0, %v423
    %v425 = vpop.f32.mrb[0].mxu0
    %v426 = vadd.f32 0.0, %v425
    %427 = vmatprep.mubr.f32.mxu0 0.0
    %428 = vmatmul.mubr.f32.gmra.mrb[0].mxu0 %v188
    %v429 = vpop.f32.mrb[0].mxu0
    %v430 = vadd.f32 0.0, %v429
    %v431 = vpop.f32.mrb[0].mxu0
    %v432 = vadd.f32 0.0, %v431
    %433 = vmatprep.mubr.f32.mxu0 0.0
    %434 = vmatmul.mubr.f32.gmra.mrb[0].mxu0 %v191
    %v435 = vpop.f32.mrb[0].mxu0
    %v436 = vadd.f32 0.0, %v435
    %v437 = vpop.f32.mrb[0].mxu0
    %v438 = vadd.f32 0.0, %v437
    %439 = vmatprep.mubr.f32.mxu0 0.0
    %440 = vmatmul.mubr.f32.gmra.mrb[0].mxu0 %v194
    %v441 = vpop.f32.mrb[0].mxu0
    %v442 = vadd.f32 0.0, %v441
    %v443 = vpop.f32.mrb[0].mxu0
    %v444 = vadd.f32 0.0, %v443
    %445 = vmatprep.mubr.f32.mxu0 0.0
    %446 = vmatmul.mubr.f32.gmra.mrb[0].mxu0 %v197
    %v447 = vpop.f32.mrb[0].mxu0
    %v448 = vadd.f32 0.0, %v447
    %v449 = vpop.f32.mrb[0].mxu0
    %v450 = vadd.f32 0.0, %v449
    %451 = vmatprep.mubr.f32.mxu0 0.0
    %452 = vmatmul.mubr.f32.gmra.mrb[0].mxu0 %v200
    %v453 = vpop.f32.mrb[0].mxu0
    %v454 = vadd.f32 0.0, %v453
    %v455 = vpop.f32.mrb[0].mxu0
    %v456 = vadd.f32 0.0, %v455
    %457 = vmatprep.mubr.f32.mxu0 0.0
    %458 = vmatmul.mubr.f32.gmra.mrb[0].mxu0 %v203
    %v459 = vpop.f32.mrb[0].mxu0
    %v460 = vadd.f32 0.0, %v459
    %v461 = vpop.f32.mrb[0].mxu0
    %v462 = vadd.f32 0.0, %v461
    %463 = vmatprep.mubr.f32.mxu0 0.0
    %464 = vmatmul.mubr.f32.gmra.mrb[0].mxu0 %v206
    %v465 = vpop.f32.mrb[0].mxu0
    %v466 = vadd.f32 0.0, %v465
    %v467 = vpop.f32.mrb[0].mxu0
    %v468 = vadd.f32 0.0, %v467
    %469 = vdwg.mxu0
    %470 = vst [vmem:[#allocation7] sm:$0xff] %v280
    %471 = vst [vmem:[#allocation7 + $0x8] sm:$0xff] %v282
    %472 = vst [vmem:[#allocation7 + $0x10] sm:$0xff] %v286
    %473 = vst [vmem:[#allocation7 + $0x18] sm:$0xff] %v288
    %474 = vst [vmem:[#allocation7 + $0x20] sm:$0xff] %v292
    %475 = vst [vmem:[#allocation7 + $0x28] sm:$0xff] %v294
    %476 = vst [vmem:[#allocation7 + $0x30] sm:$0xff] %v298
    %477 = vst [vmem:[#allocation7 + $0x38] sm:$0xff] %v300
    %478 = vst [vmem:[#allocation7 + $0x40] sm:$0xff] %v304
    %479 = vst [vmem:[#allocation7 + $0x48] sm:$0xff] %v306
    %480 = vst [vmem:[#allocation7 + $0x50] sm:$0xff] %v310
    %481 = vst [vmem:[#allocation7 + $0x58] sm:$0xff] %v312
    %482 = vst [vmem:[#allocation7 + $0x60] sm:$0xff] %v316
    %483 = vst [vmem:[#allocation7 + $0x68] sm:$0xff] %v318
    %484 = vst [vmem:[#allocation7 + $0x70] sm:$0xff] %v322
    %485 = vst [vmem:[#allocation7 + $0x78] sm:$0xff] %v324
    %486 = vst [vmem:[#allocation7 + $0x80] sm:$0xff] %v328
    %487 = vst [vmem:[#allocation7 + $0x88] sm:$0xff] %v330
    %488 = vst [vmem:[#allocation7 + $0x90] sm:$0xff] %v334
    %489 = vst [vmem:[#allocation7 + $0x98] sm:$0xff] %v336
    %490 = vst [vmem:[#allocation7 + $0xa0] sm:$0xff] %v340
    %491 = vst [vmem:[#allocation7 + $0xa8] sm:$0xff] %v342
    %492 = vst [vmem:[#allocation7 + $0xb0] sm:$0xff] %v346
    %493 = vst [vmem:[#allocation7 + $0xb8] sm:$0xff] %v348
    %494 = vst [vmem:[#allocation7 + $0xc0] sm:$0xff] %v352
    %495 = vst [vmem:[#allocation7 + $0xc8] sm:$0xff] %v354
    %496 = vst [vmem:[#allocation7 + $0xd0] sm:$0xff] %v358
    %497 = vst [vmem:[#allocation7 + $0xd8] sm:$0xff] %v360
    %498 = vst [vmem:[#allocation7 + $0xe0] sm:$0xff] %v364
    %499 = vst [vmem:[#allocation7 + $0xe8] sm:$0xff] %v366
    %500 = vst [vmem:[#allocation7 + $0xf0] sm:$0xff] %v370
    %501 = vst [vmem:[#allocation7 + $0xf8] sm:$0xff] %v372
    %502 = vst [vmem:[#allocation7 + $0x100] sm:$0xff] %v376
    %503 = vst [vmem:[#allocation7 + $0x108] sm:$0xff] %v378
    %504 = vst [vmem:[#allocation7 + $0x110] sm:$0xff] %v382
    %505 = vst [vmem:[#allocation7 + $0x118] sm:$0xff] %v384
    %506 = vst [vmem:[#allocation7 + $0x120] sm:$0xff] %v388
    %507 = vst [vmem:[#allocation7 + $0x128] sm:$0xff] %v390
    %508 = vst [vmem:[#allocation7 + $0x130] sm:$0xff] %v394
    %509 = vst [vmem:[#allocation7 + $0x138] sm:$0xff] %v396
    %510 = vst [vmem:[#allocation7 + $0x140] sm:$0xff] %v400
    %511 = vst [vmem:[#allocation7 + $0x148] sm:$0xff] %v402
    %512 = vst [vmem:[#allocation7 + $0x150] sm:$0xff] %v406
    %513 = vst [vmem:[#allocation7 + $0x158] sm:$0xff] %v408
    %514 = vst [vmem:[#allocation7 + $0x160] sm:$0xff] %v412
    %515 = vst [vmem:[#allocation7 + $0x168] sm:$0xff] %v414
    %516 = vst [vmem:[#allocation7 + $0x170] sm:$0xff] %v418
    %517 = vst [vmem:[#allocation7 + $0x178] sm:$0xff] %v420
    %518 = vst [vmem:[#allocation7 + $0x180] sm:$0xff] %v424
    %519 = vst [vmem:[#allocation7 + $0x188] sm:$0xff] %v426
    %520 = vst [vmem:[#allocation7 + $0x190] sm:$0xff] %v430
    %521 = vst [vmem:[#allocation7 + $0x198] sm:$0xff] %v432
    %522 = vst [vmem:[#allocation7 + $0x1a0] sm:$0xff] %v436
    %523 = vst [vmem:[#allocation7 + $0x1a8] sm:$0xff] %v438
    %524 = vst [vmem:[#allocation7 + $0x1b0] sm:$0xff] %v442
    %525 = vst [vmem:[#allocation7 + $0x1b8] sm:$0xff] %v444
    %526 = vst [vmem:[#allocation7 + $0x1c0] sm:$0xff] %v448
    %527 = vst [vmem:[#allocation7 + $0x1c8] sm:$0xff] %v450
    %528 = vst [vmem:[#allocation7 + $0x1d0] sm:$0xff] %v454
    %529 = vst [vmem:[#allocation7 + $0x1d8] sm:$0xff] %v456
    %530 = vst [vmem:[#allocation7 + $0x1e0] sm:$0xff] %v460
    %531 = vst [vmem:[#allocation7 + $0x1e8] sm:$0xff] %v462
    %532 = vst [vmem:[#allocation7 + $0x1f0] sm:$0xff] %v466
    %533 = vst [vmem:[#allocation7 + $0x1f8] sm:$0xff] %v468
    %s534 = scalar_lea.vmem [#allocation2], 8
    %v535 = vld [vmem:[%s534] sm:$0xff]
    %s536 = scalar_lea.vmem [#allocation5], 8
    %v537 = vld [vmem:[%s536] sm:$0xff]
    %v539 = vcombine.high %v535, %v535
    %541 = vxpose.xlu0.b32.start [1/16] %v535, 128
    %542 = vxpose.xlu0.b32.cont [2/16] 0.0, 128
    %543 = vxpose.xlu0.b32.cont [3/16] 0.0, 128
    %544 = vxpose.xlu0.b32.cont [4/16] 0.0, 128
    %545 = vxpose.xlu0.b32.cont [5/16] 0.0, 128
    %546 = vxpose.xlu0.b32.cont [6/16] 0.0, 128
    %547 = vxpose.xlu0.b32.cont [7/16] 0.0, 128
    %548 = vxpose.xlu0.b32.cont [8/16] 0.0, 128
    %549 = vxpose.xlu0.b32.cont [9/16] 0.0, 128
    %550 = vxpose.xlu0.b32.cont [10/16] 0.0, 128
    %551 = vxpose.xlu0.b32.cont [11/16] 0.0, 128
    %552 = vxpose.xlu0.b32.cont [12/16] 0.0, 128
    %553 = vxpose.xlu0.b32.cont [13/16] 0.0, 128
    %554 = vxpose.xlu0.b32.cont [14/16] 0.0, 128
    %555 = vxpose.xlu0.b32.cont [15/16] 0.0, 128
    %556 = vxpose.xlu0.b32.end [16/16] 0.0, 128
    %v557 = vpop.trf.xlu0
    %v558 = vpop.trf.xlu0
    %v559 = vpop.trf.xlu0
    %v560 = vpop.trf.xlu0
    %v561 = vpop.trf.xlu0
    %v562 = vpop.trf.xlu0
    %v563 = vpop.trf.xlu0
    %v564 = vpop.trf.xlu0
    %v565 = vpop.trf.xlu0
    %v566 = vpop.trf.xlu0
    %v567 = vpop.trf.xlu0
    %v568 = vpop.trf.xlu0
    %v569 = vpop.trf.xlu0
    %v570 = vpop.trf.xlu0
    %v571 = vpop.trf.xlu0
    %v572 = vpop.trf.xlu0
    %573 = vxpose.xlu0.b32.start [1/16] %v539, 128
    %574 = vxpose.xlu0.b32.cont [2/16] 0.0, 128
    %575 = vxpose.xlu0.b32.cont [3/16] 0.0, 128
    %576 = vxpose.xlu0.b32.cont [4/16] 0.0, 128
    %577 = vxpose.xlu0.b32.cont [5/16] 0.0, 128
    %578 = vxpose.xlu0.b32.cont [6/16] 0.0, 128
    %579 = vxpose.xlu0.b32.cont [7/16] 0.0, 128
    %580 = vxpose.xlu0.b32.cont [8/16] 0.0, 128
    %581 = vxpose.xlu0.b32.cont [9/16] 0.0, 128
    %582 = vxpose.xlu0.b32.cont [10/16] 0.0, 128
    %583 = vxpose.xlu0.b32.cont [11/16] 0.0, 128
    %584 = vxpose.xlu0.b32.cont [12/16] 0.0, 128
    %585 = vxpose.xlu0.b32.cont [13/16] 0.0, 128
    %586 = vxpose.xlu0.b32.cont [14/16] 0.0, 128
    %587 = vxpose.xlu0.b32.cont [15/16] 0.0, 128
    %588 = vxpose.xlu0.b32.end [16/16] 0.0, 128
    %v589 = vpop.trf.xlu0
    %v590 = vpop.trf.xlu0
    %v591 = vpop.trf.xlu0
    %v592 = vpop.trf.xlu0
    %v593 = vpop.trf.xlu0
    %v594 = vpop.trf.xlu0
    %v595 = vpop.trf.xlu0
    %v596 = vpop.trf.xlu0
    %v597 = vpop.trf.xlu0
    %v598 = vpop.trf.xlu0
    %v599 = vpop.trf.xlu0
    %v600 = vpop.trf.xlu0
    %v601 = vpop.trf.xlu0
    %v602 = vpop.trf.xlu0
    %v603 = vpop.trf.xlu0
    %v604 = vpop.trf.xlu0
    %v606 = vcombine.high %v537, %v537
    %v608 = vsel %vm111, %v557, 0
    %v611 = vsel %vm111, %v558, 0
    %v614 = vsel %vm111, %v559, 0
    %v617 = vsel %vm111, %v560, 0
    %v620 = vsel %vm111, %v561, 0
    %v623 = vsel %vm111, %v562, 0
    %v626 = vsel %vm111, %v563, 0
    %v629 = vsel %vm111, %v564, 0
    %v632 = vsel %vm111, %v565, 0
    %v635 = vsel %vm111, %v566, 0
    %v638 = vsel %vm111, %v567, 0
    %v641 = vsel %vm111, %v568, 0
    %v644 = vsel %vm111, %v569, 0
    %v647 = vsel %vm111, %v570, 0
    %v650 = vsel %vm111, %v571, 0
    %v653 = vsel %vm111, %v572, 0
    %v656 = vsel %vm111, %v589, 0
    %v659 = vsel %vm111, %v590, 0
    %v662 = vsel %vm111, %v591, 0
    %v665 = vsel %vm111, %v592, 0
    %v668 = vsel %vm111, %v593, 0
    %v671 = vsel %vm111, %v594, 0
    %v674 = vsel %vm111, %v595, 0
    %v677 = vsel %vm111, %v596, 0
    %v680 = vsel %vm111, %v597, 0
    %v683 = vsel %vm111, %v598, 0
    %v686 = vsel %vm111, %v599, 0
    %v689 = vsel %vm111, %v600, 0
    %v692 = vsel %vm111, %v601, 0
    %v695 = vsel %vm111, %v602, 0
    %v698 = vsel %vm111, %v603, 0
    %v701 = vsel %vm111, %v604, 0
    %v703 = vsel %vm208, %v537, 0
    %v705 = vsel %vm208, %v606, 0
    %707 = vmatprep.subr.mxu0 %v705
    %708 = vmatpush1.msra.mxu0 %v703
    %709 = vmatprep.subr.mxu0 0.0
    %710 = vmatpush1.msra.mxu0 0.0
    %711 = vmatprep.subr.mxu0 0.0
    %712 = vmatpush1.msra.mxu0 0.0
    %713 = vmatprep.subr.mxu0 0.0
    %714 = vmatpush1.msra.mxu0 0.0
    %715 = vmatprep.subr.mxu0 0.0
    %716 = vmatpush1.msra.mxu0 0.0
    %717 = vmatprep.subr.mxu0 0.0
    %718 = vmatpush1.msra.mxu0 0.0
    %719 = vmatprep.subr.mxu0 0.0
    %720 = vmatpush1.msra.mxu0 0.0
    %721 = vmatprep.subr.mxu0 0.0
    %722 = vmatpush1.msra.mxu0 0.0
    %723 = vmatprep.subr.mxu0 0.0
    %724 = vmatpush1.msra.mxu0 0.0
    %725 = vmatprep.subr.mxu0 0.0
    %726 = vmatpush1.msra.mxu0 0.0
    %727 = vmatprep.subr.mxu0 0.0
    %728 = vmatpush1.msra.mxu0 0.0
    %729 = vmatprep.subr.mxu0 0.0
    %730 = vmatpush1.msra.mxu0 0.0
    %731 = vmatprep.subr.mxu0 0.0
    %732 = vmatpush1.msra.mxu0 0.0
    %733 = vmatprep.subr.mxu0 0.0
    %734 = vmatpush1.msra.mxu0 0.0
    %735 = vmatprep.subr.mxu0 0.0
    %736 = vmatpush1.msra.mxu0 0.0
    %737 = vmatprep.subr.mxu0 0.0
    %738 = vmatpush1.msra.mxu0 0.0
    %739 = vmatprep.subr.mxu0 0.0
    %740 = vmatpush1.msra.mxu0 0.0
    %741 = vmatprep.subr.mxu0 0.0
    %742 = vmatpush1.msra.mxu0 0.0
    %743 = vmatprep.subr.mxu0 0.0
    %744 = vmatpush1.msra.mxu0 0.0
    %745 = vmatprep.subr.mxu0 0.0
    %746 = vmatpush1.msra.mxu0 0.0
    %747 = vmatprep.subr.mxu0 0.0
    %748 = vmatpush1.msra.mxu0 0.0
    %749 = vmatprep.subr.mxu0 0.0
    %750 = vmatpush1.msra.mxu0 0.0
    %751 = vmatprep.subr.mxu0 0.0
    %752 = vmatpush1.msra.mxu0 0.0
    %753 = vmatprep.subr.mxu0 0.0
    %754 = vmatpush1.msra.mxu0 0.0
    %755 = vmatprep.subr.mxu0 0.0
    %756 = vmatpush1.msra.mxu0 0.0
    %757 = vmatprep.subr.mxu0 0.0
    %758 = vmatpush1.msra.mxu0 0.0
    %759 = vmatprep.subr.mxu0 0.0
    %760 = vmatpush1.msra.mxu0 0.0
    %761 = vmatprep.subr.mxu0 0.0
    %762 = vmatpush1.msra.mxu0 0.0
    %763 = vmatprep.subr.mxu0 0.0
    %764 = vmatpush1.msra.mxu0 0.0
    %765 = vmatprep.subr.mxu0 0.0
    %766 = vmatpush1.msra.mxu0 0.0
    %767 = vmatprep.subr.mxu0 0.0
    %768 = vmatpush1.msra.mxu0 0.0
    %769 = vmatprep.subr.mxu0 0.0
    %770 = vmatpush1.msra.mxu0 0.0
    %771 = vmatprep.mubr.f32.mxu0 0.0
    %772 = vmatmul.mubr.f32.gmra.mrb[0].mxu0 %v608
    %v773 = vpop.f32.mrb[0].mxu0
    %v774 = vadd.f32 0.0, %v773
    %v775 = vpop.f32.mrb[0].mxu0
    %v776 = vadd.f32 0.0, %v775
    %777 = vmatprep.mubr.f32.mxu0 0.0
    %778 = vmatmul.mubr.f32.gmra.mrb[0].mxu0 %v611
    %v779 = vpop.f32.mrb[0].mxu0
    %v780 = vadd.f32 0.0, %v779
    %v781 = vpop.f32.mrb[0].mxu0
    %v782 = vadd.f32 0.0, %v781
    %783 = vmatprep.mubr.f32.mxu0 0.0
    %784 = vmatmul.mubr.f32.gmra.mrb[0].mxu0 %v614
    %v785 = vpop.f32.mrb[0].mxu0
    %v786 = vadd.f32 0.0, %v785
    %v787 = vpop.f32.mrb[0].mxu0
    %v788 = vadd.f32 0.0, %v787
    %789 = vmatprep.mubr.f32.mxu0 0.0
    %790 = vmatmul.mubr.f32.gmra.mrb[0].mxu0 %v617
    %v791 = vpop.f32.mrb[0].mxu0
    %v792 = vadd.f32 0.0, %v791
    %v793 = vpop.f32.mrb[0].mxu0
    %v794 = vadd.f32 0.0, %v793
    %795 = vmatprep.mubr.f32.mxu0 0.0
    %796 = vmatmul.mubr.f32.gmra.mrb[0].mxu0 %v620
    %v797 = vpop.f32.mrb[0].mxu0
    %v798 = vadd.f32 0.0, %v797
    %v799 = vpop.f32.mrb[0].mxu0
    %v800 = vadd.f32 0.0, %v799
    %801 = vmatprep.mubr.f32.mxu0 0.0
    %802 = vmatmul.mubr.f32.gmra.mrb[0].mxu0 %v623
    %v803 = vpop.f32.mrb[0].mxu0
    %v804 = vadd.f32 0.0, %v803
    %v805 = vpop.f32.mrb[0].mxu0
    %v806 = vadd.f32 0.0, %v805
    %807 = vmatprep.mubr.f32.mxu0 0.0
    %808 = vmatmul.mubr.f32.gmra.mrb[0].mxu0 %v626
    %v809 = vpop.f32.mrb[0].mxu0
    %v810 = vadd.f32 0.0, %v809
    %v811 = vpop.f32.mrb[0].mxu0
    %v812 = vadd.f32 0.0, %v811
    %813 = vmatprep.mubr.f32.mxu0 0.0
    %814 = vmatmul.mubr.f32.gmra.mrb[0].mxu0 %v629
    %v815 = vpop.f32.mrb[0].mxu0
    %v816 = vadd.f32 0.0, %v815
    %v817 = vpop.f32.mrb[0].mxu0
    %v818 = vadd.f32 0.0, %v817
    %819 = vmatprep.mubr.f32.mxu0 0.0
    %820 = vmatmul.mubr.f32.gmra.mrb[0].mxu0 %v632
    %v821 = vpop.f32.mrb[0].mxu0
    %v822 = vadd.f32 0.0, %v821
    %v823 = vpop.f32.mrb[0].mxu0
    %v824 = vadd.f32 0.0, %v823
    %825 = vmatprep.mubr.f32.mxu0 0.0
    %826 = vmatmul.mubr.f32.gmra.mrb[0].mxu0 %v635
    %v827 = vpop.f32.mrb[0].mxu0
    %v828 = vadd.f32 0.0, %v827
    %v829 = vpop.f32.mrb[0].mxu0
    %v830 = vadd.f32 0.0, %v829
    %831 = vmatprep.mubr.f32.mxu0 0.0
    %832 = vmatmul.mubr.f32.gmra.mrb[0].mxu0 %v638
    %v833 = vpop.f32.mrb[0].mxu0
    %v834 = vadd.f32 0.0, %v833
    %v835 = vpop.f32.mrb[0].mxu0
    %v836 = vadd.f32 0.0, %v835
    %837 = vmatprep.mubr.f32.mxu0 0.0
    %838 = vmatmul.mubr.f32.gmra.mrb[0].mxu0 %v641
    %v839 = vpop.f32.mrb[0].mxu0
    %v840 = vadd.f32 0.0, %v839
    %v841 = vpop.f32.mrb[0].mxu0
    %v842 = vadd.f32 0.0, %v841
    %843 = vmatprep.mubr.f32.mxu0 0.0
    %844 = vmatmul.mubr.f32.gmra.mrb[0].mxu0 %v644
    %v845 = vpop.f32.mrb[0].mxu0
    %v846 = vadd.f32 0.0, %v845
    %v847 = vpop.f32.mrb[0].mxu0
    %v848 = vadd.f32 0.0, %v847
    %849 = vmatprep.mubr.f32.mxu0 0.0
    %850 = vmatmul.mubr.f32.gmra.mrb[0].mxu0 %v647
    %v851 = vpop.f32.mrb[0].mxu0
    %v852 = vadd.f32 0.0, %v851
    %v853 = vpop.f32.mrb[0].mxu0
    %v854 = vadd.f32 0.0, %v853
    %855 = vmatprep.mubr.f32.mxu0 0.0
    %856 = vmatmul.mubr.f32.gmra.mrb[0].mxu0 %v650
    %v857 = vpop.f32.mrb[0].mxu0
    %v858 = vadd.f32 0.0, %v857
    %v859 = vpop.f32.mrb[0].mxu0
    %v860 = vadd.f32 0.0, %v859
    %861 = vmatprep.mubr.f32.mxu0 0.0
    %862 = vmatmul.mubr.f32.gmra.mrb[0].mxu0 %v653
    %v863 = vpop.f32.mrb[0].mxu0
    %v864 = vadd.f32 0.0, %v863
    %v865 = vpop.f32.mrb[0].mxu0
    %v866 = vadd.f32 0.0, %v865
    %867 = vmatprep.mubr.f32.mxu0 0.0
    %868 = vmatmul.mubr.f32.gmra.mrb[0].mxu0 %v656
    %v869 = vpop.f32.mrb[0].mxu0
    %v870 = vadd.f32 0.0, %v869
    %v871 = vpop.f32.mrb[0].mxu0
    %v872 = vadd.f32 0.0, %v871
    %873 = vmatprep.mubr.f32.mxu0 0.0
    %874 = vmatmul.mubr.f32.gmra.mrb[0].mxu0 %v659
    %v875 = vpop.f32.mrb[0].mxu0
    %v876 = vadd.f32 0.0, %v875
    %v877 = vpop.f32.mrb[0].mxu0
    %v878 = vadd.f32 0.0, %v877
    %879 = vmatprep.mubr.f32.mxu0 0.0
    %880 = vmatmul.mubr.f32.gmra.mrb[0].mxu0 %v662
    %v881 = vpop.f32.mrb[0].mxu0
    %v882 = vadd.f32 0.0, %v881
    %v883 = vpop.f32.mrb[0].mxu0
    %v884 = vadd.f32 0.0, %v883
    %885 = vmatprep.mubr.f32.mxu0 0.0
    %886 = vmatmul.mubr.f32.gmra.mrb[0].mxu0 %v665
    %v887 = vpop.f32.mrb[0].mxu0
    %v888 = vadd.f32 0.0, %v887
    %v889 = vpop.f32.mrb[0].mxu0
    %v890 = vadd.f32 0.0, %v889
    %891 = vmatprep.mubr.f32.mxu0 0.0
    %892 = vmatmul.mubr.f32.gmra.mrb[0].mxu0 %v668
    %v893 = vpop.f32.mrb[0].mxu0
    %v894 = vadd.f32 0.0, %v893
    %v895 = vpop.f32.mrb[0].mxu0
    %v896 = vadd.f32 0.0, %v895
    %897 = vmatprep.mubr.f32.mxu0 0.0
    %898 = vmatmul.mubr.f32.gmra.mrb[0].mxu0 %v671
    %v899 = vpop.f32.mrb[0].mxu0
    %v900 = vadd.f32 0.0, %v899
    %v901 = vpop.f32.mrb[0].mxu0
    %v902 = vadd.f32 0.0, %v901
    %903 = vmatprep.mubr.f32.mxu0 0.0
    %904 = vmatmul.mubr.f32.gmra.mrb[0].mxu0 %v674
    %v905 = vpop.f32.mrb[0].mxu0
    %v906 = vadd.f32 0.0, %v905
    %v907 = vpop.f32.mrb[0].mxu0
    %v908 = vadd.f32 0.0, %v907
    %909 = vmatprep.mubr.f32.mxu0 0.0
    %910 = vmatmul.mubr.f32.gmra.mrb[0].mxu0 %v677
    %v911 = vpop.f32.mrb[0].mxu0
    %v912 = vadd.f32 0.0, %v911
    %v913 = vpop.f32.mrb[0].mxu0
    %v914 = vadd.f32 0.0, %v913
    %915 = vmatprep.mubr.f32.mxu0 0.0
    %916 = vmatmul.mubr.f32.gmra.mrb[0].mxu0 %v680
    %v917 = vpop.f32.mrb[0].mxu0
    %v918 = vadd.f32 0.0, %v917
    %v919 = vpop.f32.mrb[0].mxu0
    %v920 = vadd.f32 0.0, %v919
    %921 = vmatprep.mubr.f32.mxu0 0.0
    %922 = vmatmul.mubr.f32.gmra.mrb[0].mxu0 %v683
    %v923 = vpop.f32.mrb[0].mxu0
    %v924 = vadd.f32 0.0, %v923
    %v925 = vpop.f32.mrb[0].mxu0
    %v926 = vadd.f32 0.0, %v925
    %927 = vmatprep.mubr.f32.mxu0 0.0
    %928 = vmatmul.mubr.f32.gmra.mrb[0].mxu0 %v686
    %v929 = vpop.f32.mrb[0].mxu0
    %v930 = vadd.f32 0.0, %v929
    %v931 = vpop.f32.mrb[0].mxu0
    %v932 = vadd.f32 0.0, %v931
    %933 = vmatprep.mubr.f32.mxu0 0.0
    %934 = vmatmul.mubr.f32.gmra.mrb[0].mxu0 %v689
    %v935 = vpop.f32.mrb[0].mxu0
    %v936 = vadd.f32 0.0, %v935
    %v937 = vpop.f32.mrb[0].mxu0
    %v938 = vadd.f32 0.0, %v937
    %939 = vmatprep.mubr.f32.mxu0 0.0
    %940 = vmatmul.mubr.f32.gmra.mrb[0].mxu0 %v692
    %v941 = vpop.f32.mrb[0].mxu0
    %v942 = vadd.f32 0.0, %v941
    %v943 = vpop.f32.mrb[0].mxu0
    %v944 = vadd.f32 0.0, %v943
    %945 = vmatprep.mubr.f32.mxu0 0.0
    %946 = vmatmul.mubr.f32.gmra.mrb[0].mxu0 %v695
    %v947 = vpop.f32.mrb[0].mxu0
    %v948 = vadd.f32 0.0, %v947
    %v949 = vpop.f32.mrb[0].mxu0
    %v950 = vadd.f32 0.0, %v949
    %951 = vmatprep.mubr.f32.mxu0 0.0
    %952 = vmatmul.mubr.f32.gmra.mrb[0].mxu0 %v698
    %v953 = vpop.f32.mrb[0].mxu0
    %v954 = vadd.f32 0.0, %v953
    %v955 = vpop.f32.mrb[0].mxu0
    %v956 = vadd.f32 0.0, %v955
    %957 = vmatprep.mubr.f32.mxu0 0.0
    %958 = vmatmul.mubr.f32.gmra.mrb[0].mxu0 %v701
    %v959 = vpop.f32.mrb[0].mxu0
    %v960 = vadd.f32 0.0, %v959
    %v961 = vpop.f32.mrb[0].mxu0
    %v962 = vadd.f32 0.0, %v961
    %963 = vdwg.mxu0
    %s964 = scalar_lea.vmem [#allocation7], 512
    %965 = vst [vmem:[%s964] sm:$0xff] %v774
    %966 = vst [vmem:[%s964 + $0x8] sm:$0xff] %v776
    %967 = vst [vmem:[%s964 + $0x10] sm:$0xff] %v780
    %968 = vst [vmem:[%s964 + $0x18] sm:$0xff] %v782
    %969 = vst [vmem:[%s964 + $0x20] sm:$0xff] %v786
    %970 = vst [vmem:[%s964 + $0x28] sm:$0xff] %v788
    %971 = vst [vmem:[%s964 + $0x30] sm:$0xff] %v792
    %972 = vst [vmem:[%s964 + $0x38] sm:$0xff] %v794
    %973 = vst [vmem:[%s964 + $0x40] sm:$0xff] %v798
    %974 = vst [vmem:[%s964 + $0x48] sm:$0xff] %v800
    %975 = vst [vmem:[%s964 + $0x50] sm:$0xff] %v804
    %976 = vst [vmem:[%s964 + $0x58] sm:$0xff] %v806
    %977 = vst [vmem:[%s964 + $0x60] sm:$0xff] %v810
    %978 = vst [vmem:[%s964 + $0x68] sm:$0xff] %v812
    %979 = vst [vmem:[%s964 + $0x70] sm:$0xff] %v816
    %980 = vst [vmem:[%s964 + $0x78] sm:$0xff] %v818
    %981 = vst [vmem:[%s964 + $0x80] sm:$0xff] %v822
    %982 = vst [vmem:[%s964 + $0x88] sm:$0xff] %v824
    %983 = vst [vmem:[%s964 + $0x90] sm:$0xff] %v828
    %984 = vst [vmem:[%s964 + $0x98] sm:$0xff] %v830
    %985 = vst [vmem:[%s964 + $0xa0] sm:$0xff] %v834
    %986 = vst [vmem:[%s964 + $0xa8] sm:$0xff] %v836
    %987 = vst [vmem:[%s964 + $0xb0] sm:$0xff] %v840
    %988 = vst [vmem:[%s964 + $0xb8] sm:$0xff] %v842
    %989 = vst [vmem:[%s964 + $0xc0] sm:$0xff] %v846
    %990 = vst [vmem:[%s964 + $0xc8] sm:$0xff] %v848
    %991 = vst [vmem:[%s964 + $0xd0] sm:$0xff] %v852
    %992 = vst [vmem:[%s964 + $0xd8] sm:$0xff] %v854
    %993 = vst [vmem:[%s964 + $0xe0] sm:$0xff] %v858
    %994 = vst [vmem:[%s964 + $0xe8] sm:$0xff] %v860
    %995 = vst [vmem:[%s964 + $0xf0] sm:$0xff] %v864
    %996 = vst [vmem:[%s964 + $0xf8] sm:$0xff] %v866
    %997 = vst [vmem:[%s964 + $0x100] sm:$0xff] %v870
    %998 = vst [vmem:[%s964 + $0x108] sm:$0xff] %v872
    %999 = vst [vmem:[%s964 + $0x110] sm:$0xff] %v876
    %1000 = vst [vmem:[%s964 + $0x118] sm:$0xff] %v878
    %1001 = vst [vmem:[%s964 + $0x120] sm:$0xff] %v882
    %1002 = vst [vmem:[%s964 + $0x128] sm:$0xff] %v884
    %1003 = vst [vmem:[%s964 + $0x130] sm:$0xff] %v888
    %1004 = vst [vmem:[%s964 + $0x138] sm:$0xff] %v890
    %1005 = vst [vmem:[%s964 + $0x140] sm:$0xff] %v894
    %1006 = vst [vmem:[%s964 + $0x148] sm:$0xff] %v896
    %1007 = vst [vmem:[%s964 + $0x150] sm:$0xff] %v900
    %1008 = vst [vmem:[%s964 + $0x158] sm:$0xff] %v902
    %1009 = vst [vmem:[%s964 + $0x160] sm:$0xff] %v906
    %1010 = vst [vmem:[%s964 + $0x168] sm:$0xff] %v908
    %1011 = vst [vmem:[%s964 + $0x170] sm:$0xff] %v912
    %1012 = vst [vmem:[%s964 + $0x178] sm:$0xff] %v914
    %1013 = vst [vmem:[%s964 + $0x180] sm:$0xff] %v918
    %1014 = vst [vmem:[%s964 + $0x188] sm:$0xff] %v920
    %1015 = vst [vmem:[%s964 + $0x190] sm:$0xff] %v924
    %1016 = vst [vmem:[%s964 + $0x198] sm:$0xff] %v926
    %1017 = vst [vmem:[%s964 + $0x1a0] sm:$0xff] %v930
    %1018 = vst [vmem:[%s964 + $0x1a8] sm:$0xff] %v932
    %1019 = vst [vmem:[%s964 + $0x1b0] sm:$0xff] %v936
    %1020 = vst [vmem:[%s964 + $0x1b8] sm:$0xff] %v938
    %1021 = vst [vmem:[%s964 + $0x1c0] sm:$0xff] %v942
    %1022 = vst [vmem:[%s964 + $0x1c8] sm:$0xff] %v944
    %1023 = vst [vmem:[%s964 + $0x1d0] sm:$0xff] %v948
    %1024 = vst [vmem:[%s964 + $0x1d8] sm:$0xff] %v950
    %1025 = vst [vmem:[%s964 + $0x1e0] sm:$0xff] %v954
    %1026 = vst [vmem:[%s964 + $0x1e8] sm:$0xff] %v956
    %1027 = vst [vmem:[%s964 + $0x1f0] sm:$0xff] %v960
    %1028 = vst [vmem:[%s964 + $0x1f8] sm:$0xff] %v962
    // Predicated region
    $region18: #{tpu_custom_call.1} parent=1 // pred_check
      _
    $region19: #{tpu_custom_call.1} parent=1 // pred_check_branch
      %1030 = sbr.rel (0) target = $region21
    $region20: #{tpu_custom_call.1} parent=1 // pred_region
      %s1032 = ssub.s32 16384, 16384
      %1033 = vsyncadd [#allocation4], %s1032
      %s1034 = sshll.u32 [#allocation7], 4
      %s1035 = int_to_ptr.vmem [resolvable:$true] %s1034
      %1040 = dma.vmem_to_hbm [thread:$0]  %s1035, 16384, %s2, [#allocation4], 256, 256, 16
    $region21: #{tpu_custom_call.1} parent=1 // pred_fallthru
      _
    // Predicated region
    $region22: #{tpu_custom_call.1} parent=1 // pred_check
      _
    $region23: #{tpu_custom_call.1} parent=1 // pred_check_branch
      %1042 = sbr.rel (0) target = $region25
    $region24: #{tpu_custom_call.1} parent=1 // pred_region
      %1043 = dma.done [#allocation4], 16384
    $region25: #{tpu_custom_call.1} parent=1 // pred_fallthru
      _
    %1044 = vsyncpa [#allocation3], 1
    %1045 = vsyncpa [#allocation6], 1
    %1046 = vsyncpa [#allocation4], 1

</llo_original>
